<compile_context>
chip_gen: v5e
topology: v5e:2x2
jax: 0.10.0
libtpu: 0.0.40
codegen_flags: <defaults>
</compile_context>

<pallas_src>
import numpy as np
import jax
import jax.numpy as jnp
from jax import lax
from jax.experimental import pallas as pl
from jax.experimental.pallas import tpu as pltpu


# ----------------------------------------------------------------------------
# Kernel: backbone stem GEMM, lane-dense output  (C0, TP) = (C0, K) @ (K, TP)
#         with fused BatchNorm scale/bias + ReLU epilogue (f32).
# ----------------------------------------------------------------------------
def _stem_gemm_kernel(w_ref, scale_ref, bias_ref, patch_ref, out_ref):
    acc = jnp.dot(w_ref[...], patch_ref[0], preferred_element_type=jnp.float32)
    out_ref[0] = jnp.maximum(acc * scale_ref[...] + bias_ref[...], 0.0)


def _choose_spatial_tile(p, max_tile=8192):
    """Largest lane tile <= max_tile; prefer whole extent or a divisor of p (x128)."""
    if p <= max_tile:
        return p
    t = (max_tile // 128) * 128
    while t >= 128:
        if p % t == 0:
            return t
        t -= 128
    return (max_tile // 128) * 128      # fall back: pad p up to a tile multiple


def _normalize_and_im2col(x, pixel_mean, pixel_std, *, k=3, stride=2, pad=1,
                          compute_dtype=jnp.bfloat16):
    """Plain-JAX producer (XLA fuses normalize + patch extraction into one pass).

    x: (N, C, H, W) f32 -> patches (N, C*k*k, OH*OW) in `compute_dtype`,
    with K flattened as (c, ki, kj) to match PyTorch OIHW weight.reshape(C0, -1).
    Zero padding is applied AFTER normalization (matches the reference conv).
    """
    n, c, h, w = x.shape
    inv_std = 1.0 / pixel_std
    xn = (x - pixel_mean[None, :, None, None]) * inv_std[None, :, None, None]
    xp = jnp.pad(xn, ((0, 0), (0, 0), (pad, pad), (pad, pad)))
    oh = (h + 2 * pad - k) // stride + 1
    ow = (w + 2 * pad - k) // stride + 1
    taps = []
    for di in range(k):
        for dj in range(k):
            taps.append(xp[:, :, di:di + stride * oh:stride,
                               dj:dj + stride * ow:stride])
    patches = jnp.stack(taps, axis=2)                       # (N, C, k*k, OH, OW)
    patches = patches.reshape(n, c * k * k, oh * ow)        # contiguous -> free reshape
    return patches.astype(compute_dtype), oh, ow


def pallas_backbone_stem(x_nchw, pixel_mean, pixel_std, conv_w, bn_scale, bn_bias,
                         *, max_spatial_tile=8192, compute_dtype=jnp.bfloat16):
    """normalize + Conv2d(C->C0, 3x3, s2, p1, no bias) + BN(scale,bias) + ReLU.

    x_nchw: (N, C, H, W) f32, conv_w: (C0, C, 3, 3) OIHW.  Returns (N, C0, OH, OW) f32.
    """
    N, C, H, W = x_nchw.shape
    C0 = conv_w.shape[0]
    K = C * 9

    patches, OH, OW = _normalize_and_im2col(
        x_nchw, pixel_mean, pixel_std, compute_dtype=compute_dtype)
    P = OH * OW
    tp = _choose_spatial_tile(P, max_spatial_tile)
    P_pad = pl.cdiv(P, tp) * tp
    if P_pad != P:
        patches = jnp.pad(patches, ((0, 0), (0, 0), (0, P_pad - P)))

    w2d = conv_w.reshape(C0, K).astype(compute_dtype)         # (C0, K)  MXU LHS
    scale2d = bn_scale.reshape(C0, 1).astype(jnp.float32)     # broadcast along lanes
    bias2d = bn_bias.reshape(C0, 1).astype(jnp.float32)

    out = pl.pallas_call(
        _stem_gemm_kernel,
        out_shape=jax.ShapeDtypeStruct((N, C0, P_pad), jnp.float32),
        grid=(N, P_pad // tp),
        in_specs=[
            pl.BlockSpec((C0, K), lambda n, p: (0, 0)),        # weights (resident)
            pl.BlockSpec((C0, 1), lambda n, p: (0, 0)),        # BN scale (resident)
            pl.BlockSpec((C0, 1), lambda n, p: (0, 0)),        # BN bias  (resident)
            pl.BlockSpec((1, K, tp), lambda n, p: (n, 0, p)),  # im2col patches
        ],
        out_specs=pl.BlockSpec((1, C0, tp), lambda n, p: (n, 0, p)),
        compiler_params=pltpu.CompilerParams(
            dimension_semantics=("parallel", "parallel"),
            # Budget: 2*(K*tp*2B) + 2*(C0*tp*4B) + weights < 8 MiB at tp=8192;
            # 32 MiB fits every generation incl. v7x (64 MiB physical per TC).
            vmem_limit_bytes=32 * 1024 * 1024,
        ),
    )(w2d, scale2d, bias2d, patches)

    # Lane-dense output is already channel-major per image -> NCHW without transpose.
    out = out[:, :, :P].reshape(N, C0, OH, OW)
    return out


# ----------------------------------------------------------------------------
# NeuralRecon.forward (implementable portion)
# ----------------------------------------------------------------------------
def neuralrecon_forward(imgs, pixel_mean, pixel_std, conv_w, bn_scale, bn_bias):
    """imgs: (B, V, C, H, W) -> list (length V) of per-view backbone stem features."""
    B, V, C, H, W = imgs.shape
    views = imgs.reshape(B * V, C, H, W)                 # torch.unbind(imgs, 1) equivalent
    feats = pallas_backbone_stem(views, pixel_mean, pixel_std,
                                 conv_w, bn_scale, bn_bias)
    C0, OH, OW = feats.shape[1:]
    feats = feats.reshape(B, V, C0, OH, OW)
    features = [feats[:, v] for v in range(V)]
    # TODO(synk): outputs, loss_dict = self.neucon_net(features, inputs, outputs)
    # TODO(synk): self.fuse_to_global(...) at eval time
    return features


if __name__ == "__main__":
    key = jax.random.PRNGKey(0)
    B, V, C, H, W = 2, 3, 3, 16, 16
    alpha = 1.0
    C0 = int(32 * alpha)

    k_img, k_w, k_g, k_b = jax.random.split(key, 4)
    imgs = jax.random.uniform(k_img, (B, V, C, H, W), jnp.float32) * 255.0
    pixel_mean = jnp.array([103.53, 116.28, 123.675], jnp.float32)
    pixel_std = jnp.array([58.395, 57.12, 57.375], jnp.float32)

    conv_w = jax.random.normal(k_w, (C0, C, 3, 3), jnp.float32) * 0.05
    bn_scale = 1.0 + 0.1 * jax.random.normal(k_g, (C0,), jnp.float32)
    bn_bias = 0.1 * jax.random.normal(k_b, (C0,), jnp.float32)

    fwd = jax.jit(neuralrecon_forward)   # jit so normalize fuses into patch producer
    features = fwd(imgs, pixel_mean, pixel_std, conv_w, bn_scale, bn_bias)
    features = jax.block_until_ready(features)

    # -------- reference (plain JAX, f32) --------
    views = imgs.reshape(B * V, C, H, W)
    ref_norm = (views - pixel_mean[None, :, None, None]) / pixel_std[None, :, None, None]
    ref_conv = lax.conv_general_dilated(
        ref_norm, conv_w, window_strides=(2, 2), padding=((1, 1), (1, 1)),
        dimension_numbers=("NCHW", "OIHW", "NCHW"),
        precision=lax.Precision.HIGHEST)
    ref_feat = jnp.maximum(
        ref_conv * bn_scale[None, :, None, None] + bn_bias[None, :, None, None], 0.0)
    ref_feat = ref_feat.reshape(B, V, C0, H // 2, W // 2)

    got = jnp.stack(features, axis=1)                    # (B, V, C0, OH, OW)
    # Tolerance covers bf16 operand quantization (accumulation/epilogue are f32).
    np.testing.assert_allclose(np.asarray(got), np.asarray(ref_feat),
                               rtol=2e-2, atol=2e-2)
    print("KERNEL_OK")
</pallas_src>

<mosaic_0001>
module attributes {stable_mosaic.version = 11 : i64} {
  func.func @_stem_gemm_kernel(%arg0: i32, %arg1: i32, %arg2: memref<32x27xbf16, #tpu.memory_space<vmem>>, %arg3: memref<32x1xf32, #tpu.memory_space<vmem>>, %arg4: memref<32x1xf32, #tpu.memory_space<vmem>>, %arg5: memref<1x27x64xbf16, #tpu.memory_space<vmem>>, %arg6: memref<1x32x64xf32, #tpu.memory_space<vmem>>) attributes {dimension_semantics = [#tpu.dimension_semantics<parallel>, #tpu.dimension_semantics<parallel>], iteration_bounds = array<i64: 6, 1>, scalar_prefetch = 0 : i64, scratch_operands = 0 : i64, tpu.core_type = #tpu.core_type<tc>, window_params = [{pipeline_mode = #tpu.pipeline_mode<synchronous>, transform_indices = @transform_0, window_bounds = array<i64: 32, 27>}, {pipeline_mode = #tpu.pipeline_mode<synchronous>, transform_indices = @transform_1, window_bounds = array<i64: 32, 1>}, {pipeline_mode = #tpu.pipeline_mode<synchronous>, transform_indices = @transform_2, window_bounds = array<i64: 32, 1>}, {transform_indices = @transform_3, window_bounds = array<i64: 1, 27, 64>}, {transform_indices = @transform_4, window_bounds = array<i64: 1, 32, 64>}]} {
    %c0 = arith.constant 0 : index
    %c0_0 = arith.constant 0 : index
    %0 = vector.load %arg2[%c0, %c0_0] : memref<32x27xbf16, #tpu.memory_space<vmem>>, vector<32x27xbf16>
    %c0_1 = arith.constant 0 : index
    %c0_2 = arith.constant 0 : index
    %c0_3 = arith.constant 0 : index
    %1 = vector.load %arg5[%c0_1, %c0_2, %c0_3] : memref<1x27x64xbf16, #tpu.memory_space<vmem>>, vector<1x27x64xbf16>
    %2 = vector.shape_cast %1 : vector<1x27x64xbf16> to vector<27x64xbf16>
    %cst = arith.constant dense<0.000000e+00> : vector<32x64xf32>
    %3 = tpu.matmul %0, %2, %cst {dimension_numbers = #tpu.dot_dimension_numbers<[1], [0], [0], [1], [0, 0, 1, 1], [], []>} : vector<32x27xbf16>, vector<27x64xbf16>, vector<32x64xf32> -> vector<32x64xf32>
    %c0_4 = arith.constant 0 : index
    %c0_5 = arith.constant 0 : index
    %4 = vector.load %arg3[%c0_4, %c0_5] : memref<32x1xf32, #tpu.memory_space<vmem>>, vector<32x1xf32>
    %5 = vector.broadcast %4 : vector<32x1xf32> to vector<32x64xf32>
    %6 = arith.mulf %3, %5 : vector<32x64xf32>
    %c0_6 = arith.constant 0 : index
    %c0_7 = arith.constant 0 : index
    %7 = vector.load %arg4[%c0_6, %c0_7] : memref<32x1xf32, #tpu.memory_space<vmem>>, vector<32x1xf32>
    %8 = vector.broadcast %7 : vector<32x1xf32> to vector<32x64xf32>
    %9 = arith.addf %6, %8 : vector<32x64xf32>
    %cst_8 = arith.constant 0.000000e+00 : f32
    %10 = vector.broadcast %cst_8 : f32 to vector<32x64xf32>
    %11 = arith.maximumf %9, %10 : vector<32x64xf32>
    %c0_9 = arith.constant 0 : index
    %c0_10 = arith.constant 0 : index
    %c0_11 = arith.constant 0 : index
    %12 = vector.load %arg6[%c0_9, %c0_10, %c0_11] : memref<1x32x64xf32, #tpu.memory_space<vmem>>, vector<1x32x64xf32>
    %13 = vector.shape_cast %12 : vector<1x32x64xf32> to vector<32x64xf32>
    %14 = vector.shape_cast %11 : vector<32x64xf32> to vector<1x32x64xf32>
    tpu.vector_store %arg6[%c0_9, %c0_10, %c0_11], %14 {strides = array<i32>} : memref<1x32x64xf32, #tpu.memory_space<vmem>>, vector<1x32x64xf32>,
    return
  }
  func.func @transform_0(%arg0: i32, %arg1: i32) -> (i32, i32) {
    %c0_i32 = arith.constant 0 : i32
    %c0_i32_0 = arith.constant 0 : i32
    %c0_i32_1 = arith.constant 0 : i32
    return %c0_i32, %c0_i32_0 : i32, i32
  }
  func.func @transform_1(%arg0: i32, %arg1: i32) -> (i32, i32) {
    %c0_i32 = arith.constant 0 : i32
    %c0_i32_0 = arith.constant 0 : i32
    %c0_i32_1 = arith.constant 0 : i32
    return %c0_i32, %c0_i32_0 : i32, i32
  }
  func.func @transform_2(%arg0: i32, %arg1: i32) -> (i32, i32) {
    %c0_i32 = arith.constant 0 : i32
    %c0_i32_0 = arith.constant 0 : i32
    %c0_i32_1 = arith.constant 0 : i32
    return %c0_i32, %c0_i32_0 : i32, i32
  }
  func.func @transform_3(%arg0: i32, %arg1: i32) -> (i32, i32, i32) {
    %c0_i32 = arith.constant 0 : i32
    %c0_i32_0 = arith.constant 0 : i32
    return %arg0, %c0_i32, %arg1 : i32, i32, i32
  }
  func.func @transform_4(%arg0: i32, %arg1: i32) -> (i32, i32, i32) {
    %c0_i32 = arith.constant 0 : i32
    %c0_i32_0 = arith.constant 0 : i32
    return %arg0, %c0_i32, %arg1 : i32, i32, i32
  }
}

</mosaic_0001>

<llo_original>
// kernel: neuralrecon_forward.1
$region0: #{neuralrecon_forward.1}
  #allocation0 [shape = 'u32[]', space=smem, size = 0x4, offset = 0x4, fixed_abs, tag = 'smem constant byte address 0x4 - core index']
  #allocation1 [shape = 'u32[72,128]{1,0:T(1,128)}', space=vmem, size = 0x9000, scoped, tag = 'internal scratch']
  %s0 = inlined_call_operand.vmem [shape: bf16[32,27], index: 0, kind: input, shape index: {}]
  %s1 = inlined_call_operand.vmem [shape: f32[32,1], index: 1, kind: input, shape index: {}]
  %s2 = inlined_call_operand.vmem [shape: f32[32,1], index: 2, kind: input, shape index: {}]
  %s3 = inlined_call_operand.vmem [shape: bf16[6,27,64], index: 3, kind: input, shape index: {}]
  %s4 = inlined_call_operand.vmem [shape: f32[6,32,64], index: 4, kind: output, shape index: {}]
  %s5 = sld [smem:[#allocation0]]
  $region49: #{neuralrecon_forward.1} parent=0
    _
  %s7 = ssub.s32 1, %s5
  %s8 = scalar_select 0, %s7, %s5
  loop: start=0, step=1, limit=8
  $region2: #{neuralrecon_forward.1} parent=0 // loop_pre_header
    _
  $region3: #{neuralrecon_forward.1} parent=0 // loop_header
    %s10 = sphi 0, %s14
    %p11 = scmp.ge.s32.totalorder %s10, 8
    %s17 = sphi 0, %s29
    %s18 = sphi 0, %s25
    %s19 = sphi 0, %s17
    %s20 = sphi 0, %s18
    %s21 = sphi 0, %s19
    %s22 = sphi 0, %s20
    %s30 = sphi 0, %s30
    %s32 = sphi 0, %s30
    %s33 = sphi 0, %s32
    %s47 = sphi 0, %s33
    %s51 = sphi 0, %s51
    %s53 = sphi 0, %s51
    %s54 = sphi 0, %s53
    %s68 = sphi 0, %s54
    %s72 = sphi 0, %s72
    %s74 = sphi 0, %s72
    %s75 = sphi 0, %s74
    %s89 = sphi 0, %s75
    %s97 = sphi 0, %s99
    %s100 = sphi 0, %s97
    %s101 = sphi 0, %s100
    %s117 = sphi 0, %s101
    %s125 = sphi 0, %s127
    %s128 = sphi 0, %s125
    %s129 = sphi 0, %s128
    %s145 = sphi 0, %s129
  $region4: #{neuralrecon_forward.1} parent=0 // loop_header_branch
    %13 = sbr.rel (%p11) target = $region8
  $region5: #{neuralrecon_forward.1} parent=0 // loop_body
    %s15 = ssub.s32 %s10, 1
    %s16 = ssub.s32 %s10, 2
    %s23 = sadd.s32 1, %s18
    %p24 = scmp.ge.s32.totalorder %s23, 1
    %s25 = scalar_select %p24, 0, %s23
    %s26 = sadd.s32 1, %s17
    %s27 = scalar_select %p24, %s26, %s17
    %p28 = scmp.ge.s32.totalorder %s27, 6
    %s29 = scalar_select %p28, 0, %s27
    %s31 = sadd.s32 %s30, 1
    %p34 = scmp.eq.s32.totalorder %s10, 5
    %p35 = scmp.ne.s32.totalorder %s30, %s32
    %p36 = scmp.eq.s32.totalorder %s10, 0
    %p37 = por %p35, %p36
    %p38 = scmp.ne.s32.totalorder %s30, %s32
    %p39 = scmp.eq.s32.totalorder %s15, 5
    %p40 = por %p38, %p39
    %p41 = scmp.ne.s32.totalorder %s32, %s33
    %p42 = scmp.eq.s32.totalorder %s15, 0
    %p43 = por %p41, %p42
    %p44 = scmp.ne.s32.totalorder %s32, %s33
    %p45 = scmp.eq.s32.totalorder %s16, 5
    %p46 = por %p44, %p45
    %p48 = scmp.ne.s32.totalorder %s33, %s47
    %p49 = scmp.eq.s32.totalorder %s16, 0
    %p50 = por %p48, %p49
    %s52 = sadd.s32 %s51, 1
    %p55 = scmp.eq.s32.totalorder %s10, 5
    %p56 = scmp.ne.s32.totalorder %s51, %s53
    %p57 = scmp.eq.s32.totalorder %s10, 0
    %p58 = por %p56, %p57
    %p59 = scmp.ne.s32.totalorder %s51, %s53
    %p60 = scmp.eq.s32.totalorder %s15, 5
    %p61 = por %p59, %p60
    %p62 = scmp.ne.s32.totalorder %s53, %s54
    %p63 = scmp.eq.s32.totalorder %s15, 0
    %p64 = por %p62, %p63
    %p65 = scmp.ne.s32.totalorder %s53, %s54
    %p66 = scmp.eq.s32.totalorder %s16, 5
    %p67 = por %p65, %p66
    %p69 = scmp.ne.s32.totalorder %s54, %s68
    %p70 = scmp.eq.s32.totalorder %s16, 0
    %p71 = por %p69, %p70
    %s73 = sadd.s32 %s72, 1
    %p76 = scmp.eq.s32.totalorder %s10, 5
    %p77 = scmp.ne.s32.totalorder %s72, %s74
    %p78 = scmp.eq.s32.totalorder %s10, 0
    %p79 = por %p77, %p78
    %p80 = scmp.ne.s32.totalorder %s72, %s74
    %p81 = scmp.eq.s32.totalorder %s15, 5
    %p82 = por %p80, %p81
    %p83 = scmp.ne.s32.totalorder %s74, %s75
    %p84 = scmp.eq.s32.totalorder %s15, 0
    %p85 = por %p83, %p84
    %p86 = scmp.ne.s32.totalorder %s74, %s75
    %p87 = scmp.eq.s32.totalorder %s16, 5
    %p88 = por %p86, %p87
    %p90 = scmp.ne.s32.totalorder %s75, %s89
    %p91 = scmp.eq.s32.totalorder %s16, 0
    %p92 = por %p90, %p91
    %s93 = ssub.s32 %s17, %s29
    %s94 = ssub.s32 %s18, %s25
    %s95 = sor.u32 %s93, %s94
    %p96 = scmp.eq.s32.totalorder %s95, 0
    %s98 = sadd.s32 %s97, 1
    %s99 = scalar_select %p96, %s97, %s98
    %p102 = pneg %p96
    %p103 = scmp.eq.s32.totalorder %s10, 5
    %p104 = por %p102, %p103
    %p105 = scmp.ne.s32.totalorder %s97, %s100
    %p106 = scmp.eq.s32.totalorder %s10, 0
    %p107 = por %p105, %p106
    %p108 = scmp.ne.s32.totalorder %s97, %s100
    %p109 = scmp.eq.s32.totalorder %s15, 5
    %p110 = por %p108, %p109
    %p111 = scmp.ne.s32.totalorder %s100, %s101
    %p112 = scmp.eq.s32.totalorder %s15, 0
    %p113 = por %p111, %p112
    %p114 = scmp.ne.s32.totalorder %s100, %s101
    %p115 = scmp.eq.s32.totalorder %s16, 5
    %p116 = por %p114, %p115
    %p118 = scmp.ne.s32.totalorder %s101, %s117
    %p119 = scmp.eq.s32.totalorder %s16, 0
    %p120 = por %p118, %p119
    %s121 = ssub.s32 %s17, %s29
    %s122 = ssub.s32 %s18, %s25
    %s123 = sor.u32 %s121, %s122
    %p124 = scmp.eq.s32.totalorder %s123, 0
    %s126 = sadd.s32 %s125, 1
    %s127 = scalar_select %p124, %s125, %s126
    %p130 = pneg %p124
    %p131 = scmp.eq.s32.totalorder %s10, 5
    %p132 = por %p130, %p131
    %p133 = scmp.ne.s32.totalorder %s125, %s128
    %p134 = scmp.eq.s32.totalorder %s10, 0
    %p135 = por %p133, %p134
    %p136 = scmp.ne.s32.totalorder %s125, %s128
    %p137 = scmp.eq.s32.totalorder %s15, 5
    %p138 = por %p136, %p137
    %p139 = scmp.ne.s32.totalorder %s128, %s129
    %p140 = scmp.eq.s32.totalorder %s15, 0
    %p141 = por %p139, %p140
    %p142 = scmp.ne.s32.totalorder %s128, %s129
    %p143 = scmp.eq.s32.totalorder %s16, 5
    %p144 = por %p142, %p143
    %p146 = scmp.ne.s32.totalorder %s129, %s145
    %p147 = scmp.eq.s32.totalorder %s16, 0
    %p148 = por %p146, %p147
    %p149 = scmp.le.s32.totalorder 1, %s10
    %p150 = scmp.lt.s32.totalorder %s10, 7
    %p151 = pnand %p149, %p150
    %p152 = pneg %p151
    // Predicated region
    $region9: #{neuralrecon_forward.1} parent=5 // pred_check
      _
    $region10: #{neuralrecon_forward.1} parent=5 // pred_check_branch
      %154 = sbr.rel (%p151) target = $region12
    $region11: #{neuralrecon_forward.1} parent=5 // pred_region
      %s155 = ssub.s32 %s10, 1
      // Predicated region
      $region13: #{neuralrecon_forward.1} parent=11 // pred_check
        %p156 = pneg %p43
      $region14: #{neuralrecon_forward.1} parent=11 // pred_check_branch
        %158 = sbr.rel (%p156) target = $region16
      $region15: #{neuralrecon_forward.1} parent=11 // pred_region
        _
      $region16: #{neuralrecon_forward.1} parent=11 // pred_fallthru
        _
      // Predicated region
      $region17: #{neuralrecon_forward.1} parent=11 // pred_check
        %p159 = pneg %p64
      $region18: #{neuralrecon_forward.1} parent=11 // pred_check_branch
        %161 = sbr.rel (%p159) target = $region20
      $region19: #{neuralrecon_forward.1} parent=11 // pred_region
        _
      $region20: #{neuralrecon_forward.1} parent=11 // pred_fallthru
        _
      // Predicated region
      $region21: #{neuralrecon_forward.1} parent=11 // pred_check
        %p162 = pneg %p85
      $region22: #{neuralrecon_forward.1} parent=11 // pred_check_branch
        %164 = sbr.rel (%p162) target = $region24
      $region23: #{neuralrecon_forward.1} parent=11 // pred_region
        _
      $region24: #{neuralrecon_forward.1} parent=11 // pred_fallthru
        _
    $region12: #{neuralrecon_forward.1} parent=5 // pred_fallthru
      _
    %p165 = scmp.lt.s32.totalorder %s10, 6
    // Predicated region
    $region25: #{neuralrecon_forward.1} parent=5 // pred_check
      %p166 = pneg %p165
    $region26: #{neuralrecon_forward.1} parent=5 // pred_check_branch
      %168 = sbr.rel (%p166) target = $region28
    $region27: #{neuralrecon_forward.1} parent=5 // pred_region
      // Predicated region
      $region29: #{neuralrecon_forward.1} parent=27 // pred_check
        %p169 = pneg %p107
      $region30: #{neuralrecon_forward.1} parent=27 // pred_check_branch
        %171 = sbr.rel (%p169) target = $region32
      $region31: #{neuralrecon_forward.1} parent=27 // pred_region
        %p172 = scmp.lt.s32.totalorder %s17, 5
        %s173 = scalar_select %p172, %s17, 5
        %p174 = scmp.lt.s32.totalorder %s18, 0
        %s175 = scalar_select %p174, %s18, 0
        %s176 = smul.addr %s173, 4
        %s177 = sadd.s32 %s175, %s176
        %s178 = smul.addr %s177, 4
        %s179 = scalar_lea.vmem %s3, %s178
      $region32: #{neuralrecon_forward.1} parent=27 // pred_fallthru
        _
    $region28: #{neuralrecon_forward.1} parent=5 // pred_fallthru
      _
    %p180 = scmp.le.s32.totalorder 1, %s10
    %p181 = scmp.lt.s32.totalorder %s10, 7
    %p182 = pnand %p180, %p181
    %p183 = pneg %p182
    // Predicated region
    $region33: #{neuralrecon_forward.1} parent=5 // pred_check
      _
    $region34: #{neuralrecon_forward.1} parent=5 // pred_check_branch
      %185 = sbr.rel (%p182) target = $region36
    $region35: #{neuralrecon_forward.1} parent=5 // pred_region
      %s186 = ssub.s32 %s10, 1
      %p187 = pneg %p43
      %p188 = pneg %p40
      %p189 = pneg %p64
      %p190 = pneg %p61
      %p191 = pneg %p85
      %p192 = pneg %p82
      %p193 = scmp.lt.s32.totalorder %s19, 5
      %s194 = scalar_select %p193, %s19, 5
      %p195 = scmp.lt.s32.totalorder %s20, 0
      %s196 = scalar_select %p195, %s20, 0
      %s197 = smul.addr %s194, 4
      %s198 = sadd.s32 %s196, %s197
      %s199 = smul.addr %s198, 4
      %s200 = scalar_lea.vmem %s3, %s199
      %p201 = pneg %p113
      %p202 = pneg %p110
      %p203 = pneg %p141
      %p204 = pneg %p138
      %p205 = scmp.lt.s32.totalorder %s19, 5
      %s206 = scalar_select %p205, %s19, 5
      %p207 = scmp.lt.s32.totalorder %s20, 0
      %s208 = scalar_select %p207, %s20, 0
      %s209 = smul.addr %s206, 4
      %s210 = sadd.s32 %s208, %s209
      %s211 = smul.addr %s210, 8
      %s212 = scalar_lea.vmem %s4, %s211
      %p213 = scmp.lt.s32.totalorder %s19, 5
      %s214 = scalar_select %p213, %s19, 5
      %p215 = scmp.lt.s32.totalorder %s20, 0
      %s216 = scalar_select %p215, %s20, 0
      %s217 = smul.addr %s214, 4
      %s218 = sadd.s32 %s216, %s217
      %s219 = smul.addr %s218, 4
      %s220 = scalar_lea.vmem %s3, %s219
      %p221 = scmp.lt.s32.totalorder %s19, 5
      %s222 = scalar_select %p221, %s19, 5
      %p223 = scmp.lt.s32.totalorder %s20, 0
      %s224 = scalar_select %p223, %s20, 0
      %s225 = smul.addr %s222, 4
      %s226 = sadd.s32 %s224, %s225
      %s227 = smul.addr %s226, 8
      %s228 = scalar_lea.vmem %s4, %s227
      %v230 = vld [vmem:[%s0] sm:$0xf]
      %v231 = vld [vmem:[%s0 + $0x4] sm:$0xf]
      %v232 = vld [vmem:[%s0 + $0x8] sm:$0xf]
      %v233 = vld [vmem:[%s0 + $0xc] sm:$0xf]
      %v234 = vld [vmem:[%s220] sm:$0xf]
      %v235 = vld [vmem:[%s220 + $0x4] sm:$0xf]
      %v236 = vld [vmem:[%s220 + $0x8] sm:$0xf]
      %v237 = vld [vmem:[%s220 + $0xc] sm:$0x3]
      %v242 = vunpack.c.l.b16 %v230
      %v243 = vunpack.c.l.b16 %v231
      %v244 = vunpack.c.l.b16 %v232
      %v245 = vunpack.c.l.b16 %v233
      %v246 = vpack.c.b16 %v243, %v242
      %v247 = vpack.c.b16 %v245, %v244
      %v252 = vunpack.c.l.b16 %v234
      %v253 = vunpack.c.l.b16 %v235
      %v254 = vunpack.c.l.b16 %v236
      %v255 = vunpack.c.l.b16 %v237
      %v256 = vpack.c.b16 %v253, %v252
      %v257 = vpack.c.b16 %v255, %v254
      %vm259 = vcmask 220160
      %v261 = vsel %vm259, %v246, 0
      %v264 = vsel %vm259, %v247, 0
      %vm266 = vcmask 1044480
      %vm267 = vcmask 1045504
      %v268 = vsel %vm266, 4294967295, 65535
      %v269 = vsel %vm267, %v268, 0
      %v271 = vand.u32 %v257, %v269
      %273 = vmatpush.bf16.msra.mxu0 0
      %274 = vmatpush.bf16.msra.mxu0 0
      %275 = vmatpush.bf16.msra.mxu0 0
      %276 = vmatpush.bf16.msra.mxu0 0
      %277 = vmatpush.bf16.msra.mxu0 0
      %278 = vmatpush.bf16.msra.mxu0 0
      %279 = vmatpush.bf16.msra.mxu0 %v271
      %280 = vmatpush.bf16.msra.mxu0 %v256
      %281 = vmatmul.bf16.gmra.mxu0 %v261
      %v282 = vpop.f32.mrf.mxu0
      %v283 = vadd.f32 0.0, %v282
      %v284 = vpop.f32.mrf.mxu0
      %v285 = vadd.f32 0.0, %v284
      %286 = vmatmul.bf16.gmra.mxu0 %v264
      %v287 = vpop.f32.mrf.mxu0
      %v288 = vadd.f32 0.0, %v287
      %v289 = vpop.f32.mrf.mxu0
      %v290 = vadd.f32 0.0, %v289
      %291 = vdwg.mxu0
      %v292 = vld [vmem:[%s1] sm:$0xff]
      %v293 = vld [vmem:[%s1 + $0x8] sm:$0xff]
      %v294 = vld [vmem:[%s1 + $0x10] sm:$0xff]
      %v295 = vld [vmem:[%s1 + $0x18] sm:$0xff]
      %297 = vset.pattern.permute.xlu0 0
      %298 = vperm.xlu0 %297, %v292
      %v299 = vpop.permute.xlu0 %298
      %302 = vset.pattern.permute.xlu0 0
      %303 = vperm.xlu0 %302, %v293
      %v304 = vpop.permute.xlu0 %303
      %307 = vset.pattern.permute.xlu0 0
      %308 = vperm.xlu0 %307, %v294
      %v309 = vpop.permute.xlu0 %308
      %312 = vset.pattern.permute.xlu0 0
      %313 = vperm.xlu0 %312, %v295
      %v314 = vpop.permute.xlu0 %313
      %v316 = vmul.f32 %v283, %v299
      %v317 = vmul.f32 %v285, %v304
      %v318 = vmul.f32 %v288, %v309
      %v319 = vmul.f32 %v290, %v314
      %v320 = vld [vmem:[%s2] sm:$0xff]
      %v321 = vld [vmem:[%s2 + $0x8] sm:$0xff]
      %v322 = vld [vmem:[%s2 + $0x10] sm:$0xff]
      %v323 = vld [vmem:[%s2 + $0x18] sm:$0xff]
      %325 = vset.pattern.permute.xlu0 0
      %326 = vperm.xlu0 %325, %v320
      %v327 = vpop.permute.xlu0 %326
      %330 = vset.pattern.permute.xlu0 0
      %331 = vperm.xlu0 %330, %v321
      %v332 = vpop.permute.xlu0 %331
      %335 = vset.pattern.permute.xlu0 0
      %336 = vperm.xlu0 %335, %v322
      %v337 = vpop.permute.xlu0 %336
      %340 = vset.pattern.permute.xlu0 0
      %341 = vperm.xlu0 %340, %v323
      %v342 = vpop.permute.xlu0 %341
      %v344 = vadd.f32 %v316, %v327
      %v345 = vadd.f32 %v317, %v332
      %v346 = vadd.f32 %v318, %v337
      %v347 = vadd.f32 %v319, %v342
      %v348 = vmax.f32 %v344, 0.0
      %v349 = vmax.f32 %v345, 0.0
      %v350 = vmax.f32 %v346, 0.0
      %v351 = vmax.f32 %v347, 0.0
      %vm352 = vcmask 523264
      %353 = vst.msk [vmem:[%s228] sm:$0xff] %vm352, %v348
      %354 = vst.msk [vmem:[%s228 + $0x8] sm:$0xff] %vm352, %v349
      %355 = vst.msk [vmem:[%s228 + $0x10] sm:$0xff] %vm352, %v350
      %356 = vst.msk [vmem:[%s228 + $0x18] sm:$0xff] %vm352, %v351
      %p357 = scmp.lt.s32.totalorder %s19, 5
      %s358 = scalar_select %p357, %s19, 5
      %p359 = scmp.lt.s32.totalorder %s20, 0
      %s360 = scalar_select %p359, %s20, 0
      %s361 = smul.addr %s358, 4
      %s362 = sadd.s32 %s360, %s361
      %s363 = smul.addr %s362, 8
      %s364 = scalar_lea.vmem %s4, %s363
      // Predicated region
      $region37: #{neuralrecon_forward.1} parent=35 // pred_check
        %p365 = pneg %p138
      $region38: #{neuralrecon_forward.1} parent=35 // pred_check_branch
        %367 = sbr.rel (%p365) target = $region40
      $region39: #{neuralrecon_forward.1} parent=35 // pred_region
        _
      $region40: #{neuralrecon_forward.1} parent=35 // pred_fallthru
        _
    $region36: #{neuralrecon_forward.1} parent=5 // pred_fallthru
      _
    %p368 = scmp.le.s32.totalorder 2, %s10
    // Predicated region
    $region41: #{neuralrecon_forward.1} parent=5 // pred_check
      %p369 = pneg %p368
    $region42: #{neuralrecon_forward.1} parent=5 // pred_check_branch
      %371 = sbr.rel (%p369) target = $region44
    $region43: #{neuralrecon_forward.1} parent=5 // pred_region
      %s372 = ssub.s32 %s10, 2
      // Predicated region
      $region45: #{neuralrecon_forward.1} parent=43 // pred_check
        %p373 = pneg %p144
      $region46: #{neuralrecon_forward.1} parent=43 // pred_check_branch
        %375 = sbr.rel (%p373) target = $region48
      $region47: #{neuralrecon_forward.1} parent=43 // pred_region
        %p376 = scmp.lt.s32.totalorder %s21, 5
        %s377 = scalar_select %p376, %s21, 5
        %p378 = scmp.lt.s32.totalorder %s22, 0
        %s379 = scalar_select %p378, %s22, 0
        %s380 = smul.addr %s377, 4
        %s381 = sadd.s32 %s379, %s380
        %s382 = smul.addr %s381, 8
        %s383 = scalar_lea.vmem %s4, %s382
      $region48: #{neuralrecon_forward.1} parent=43 // pred_fallthru
        _
    $region44: #{neuralrecon_forward.1} parent=5 // pred_fallthru
      _
  $region6: #{neuralrecon_forward.1} parent=0 // loop_footer
    %s14 = sadd.s32 1, %s10
  $region7: #{neuralrecon_forward.1} parent=0 // loop_footer_branch
    %9 = sbr.rel target = $region3
  $region8: #{neuralrecon_forward.1} parent=0 // loop_exit
    _

</llo_original>
